<compile_context>
chip_gen: v7x
topology: tpu7x:2x2x1
jax: 0.10.0
libtpu: 0.0.40
codegen_flags: <defaults>
</compile_context>

<pallas_src>
import functools

import jax
import jax.numpy as jnp
from jax.experimental import pallas as pl
from jax.experimental.pallas import tpu as pltpu

LANES = 128
TILE_R_MAX = 2048  # rows per grid step: 2048 * 128 * 4B = 1 MiB per input


def _l1_partial_kernel(p_ref, t_ref, o_ref, acc_ref, *,
                       rows, tile_r, blocks_per_split, need_mask):
    split = pl.program_id(0)   # "parallel" axis (megacore split)
    step = pl.program_id(1)    # "arbitrary" reduction axis

    @pl.when(step == 0)
    def _():
        acc_ref[...] = jnp.zeros_like(acc_ref)

    diff = jnp.abs(p_ref[...].astype(jnp.float32) -
                   t_ref[...].astype(jnp.float32))

    if need_mask:
        # Zero out rows that fall past the true row count (partial boundary
        # tiles and fully-out-of-range duplicated tiles from the clamped
        # index_map).  Static flag: skipped entirely when tiling is exact.
        block_g = split * blocks_per_split + step
        row_ids = block_g * tile_r + jax.lax.broadcasted_iota(
            jnp.int32, (tile_r, LANES), 0)
        diff = jnp.where(row_ids < rows, diff, 0.0)

    # Sublane-only reduction; keeps a full vreg-row of partial sums resident.
    acc_ref[...] += jnp.sum(diff, axis=0, keepdims=True)

    @pl.when(step == pl.num_programs(1) - 1)
    def _():
        o_ref[...] = acc_ref[...]


def focus_metrics_l1(prediction, target):
    """Mean absolute error between prediction.reshape(-1) and target.reshape(-1).

    Returns a device f32 scalar (convert to Python float only at logging time).
    """
    pred_flat = prediction.reshape(-1)
    targ_flat = target.reshape(-1)
    assert pred_flat.shape == targ_flat.shape, "prediction/target size mismatch"
    n_total = pred_flat.shape[0]
    if n_total == 0:
        return jnp.float32(jnp.nan)  # matches torch mean over empty tensor

    # Only pad (a copy) when N is not a multiple of 128; typical NCHW tensors
    # avoid this path entirely.  Padded zeros contribute |0-0| = 0.
    pad = (-n_total) % LANES
    if pad:
        pred_flat = jnp.pad(pred_flat, (0, pad))
        targ_flat = jnp.pad(targ_flat, (0, pad))

    rows = pred_flat.shape[0] // LANES
    pred2d = pred_flat.reshape(rows, LANES)   # free reshape (contiguous)
    targ2d = targ_flat.reshape(rows, LANES)

    # Tile sizing: full extent for small inputs, else a large (8,128)-aligned
    # row tile.
    tile_r = TILE_R_MAX if rows > TILE_R_MAX else rows
    num_blocks = (rows + tile_r - 1) // tile_r
    num_splits = 2 if num_blocks >= 2 else 1          # 2-way split for v7x megacore
    bps = (num_blocks + num_splits - 1) // num_splits  # blocks per split
    need_mask = (num_splits * bps * tile_r) != rows

    kernel = functools.partial(
        _l1_partial_kernel,
        rows=rows, tile_r=tile_r, blocks_per_split=bps, need_mask=need_mask)

    # Clamp the block index so over-covered steps re-read a valid block (their
    # contribution is zeroed by the in-kernel mask).
    def in_map(c, i):
        return (jnp.minimum(c * bps + i, num_blocks - 1), 0)

    partials = pl.pallas_call(
        kernel,
        out_shape=jax.ShapeDtypeStruct((num_splits, LANES), jnp.float32),
        grid_spec=pltpu.PrefetchScalarGridSpec(
            num_scalar_prefetch=0,
            grid=(num_splits, bps),
            in_specs=[
                pl.BlockSpec((tile_r, LANES), in_map),
                pl.BlockSpec((tile_r, LANES), in_map),
            ],
            out_specs=pl.BlockSpec((1, LANES), lambda c, i: (c, 0)),
            scratch_shapes=[pltpu.VMEM((1, LANES), jnp.float32)],
        ),
        compiler_params=pltpu.CompilerParams(
            dimension_semantics=("parallel", "arbitrary"),
        ),
    )(pred2d, targ2d)

    # Final cross-lane / cross-split reduce + mean (done once, on device).
    return jnp.sum(partials) * (1.0 / n_total)


def focus_metrics_forward(prediction, target):
    """Mirror of FocusMetrics.forward: returns {'l1_loss': python float}.

    Note: the .item()-style host conversion forces a device sync; inside
    jitted training/eval loops prefer focus_metrics_l1 (device scalar).
    """
    l1_value = focus_metrics_l1(prediction, target)
    return {"l1_loss": float(jax.device_get(l1_value))}


if __name__ == "__main__":
    key = jax.random.PRNGKey(0)
    k_pred, k_targ, k_p2, k_t2 = jax.random.split(key, 4)

    # Small NCHW prediction + flat target of the same element count.
    prediction = jax.random.normal(k_pred, (2, 4, 16, 16), dtype=jnp.float32)
    target = jax.random.normal(k_targ, (2 * 4 * 16 * 16,), dtype=jnp.float32)

    l1 = jax.block_until_ready(focus_metrics_l1(prediction, target))
    ref = jnp.mean(jnp.abs(prediction.reshape(-1) - target))
    assert jnp.allclose(l1, ref, rtol=1e-5, atol=1e-6), (l1, ref)

    # Second check: unaligned size exercising masking, padding fallback, the
    # 2-way split, and the clamped partial last block.
    n2 = 2 * TILE_R_MAX * LANES + 777
    pred2 = jax.random.normal(k_p2, (n2,), dtype=jnp.float32)
    targ2 = jax.random.normal(k_t2, (n2,), dtype=jnp.float32)
    l1b = jax.block_until_ready(focus_metrics_l1(pred2, targ2))
    refb = jnp.mean(jnp.abs(pred2 - targ2))
    assert jnp.allclose(l1b, refb, rtol=1e-4, atol=1e-6), (l1b, refb)

    result = focus_metrics_forward(prediction, target)
    assert isinstance(result["l1_loss"], float)
    print("KERNEL_OK")
</pallas_src>

<mosaic_0001>
module attributes {stable_mosaic.version = 11 : i64} {
  func.func @_l1_partial_kernel(%arg0: i32, %arg1: i32, %arg2: memref<16x128xf32, #tpu.memory_space<vmem>>, %arg3: memref<16x128xf32, #tpu.memory_space<vmem>>, %arg4: memref<1x128xf32, #tpu.memory_space<vmem>>, %arg5: memref<1x128xf32, #tpu.memory_space<vmem>>) attributes {dimension_semantics = [#tpu.dimension_semantics<parallel>, #tpu.dimension_semantics<arbitrary>], iteration_bounds = array<i64: 1, 1>, scalar_prefetch = 0 : i64, scratch_operands = 1 : i64, tpu.core_type = #tpu.core_type<tc>, window_params = [{transform_indices = @transform_0, window_bounds = array<i64: 16, 128>}, {transform_indices = @transform_1, window_bounds = array<i64: 16, 128>}, {transform_indices = @transform_2, window_bounds = array<i64: 1, 128>}]} {
    %c0_i32 = arith.constant 0 : i32
    %0 = arith.cmpi eq, %arg1, %c0_i32 : i32
    %1 = arith.extui %0 : i1 to i32
    %c0_i32_0 = arith.constant 0 : i32
    %2 = arith.cmpi ne, %1, %c0_i32_0 : i32
    scf.if %2 {
      %cst_10 = arith.constant 0.000000e+00 : f32
      %15 = vector.broadcast %cst_10 : f32 to vector<1x128xf32>
      %c0_11 = arith.constant 0 : index
      %c0_12 = arith.constant 0 : index
      %16 = vector.load %arg5[%c0_11, %c0_12] : memref<1x128xf32, #tpu.memory_space<vmem>>, vector<1x128xf32>
      tpu.vector_store %arg5[%c0_11, %c0_12], %15 {strides = array<i32>} : memref<1x128xf32, #tpu.memory_space<vmem>>, vector<1x128xf32>,
    } else {
    }
    %c0 = arith.constant 0 : index
    %c0_1 = arith.constant 0 : index
    %3 = vector.load %arg2[%c0, %c0_1] : memref<16x128xf32, #tpu.memory_space<vmem>>, vector<16x128xf32>
    %c0_2 = arith.constant 0 : index
    %c0_3 = arith.constant 0 : index
    %4 = vector.load %arg3[%c0_2, %c0_3] : memref<16x128xf32, #tpu.memory_space<vmem>>, vector<16x128xf32>
    %5 = arith.subf %3, %4 : vector<16x128xf32>
    %6 = math.absf %5 : vector<16x128xf32>
    %c0_4 = arith.constant 0 : index
    %c0_5 = arith.constant 0 : index
    %7 = vector.load %arg5[%c0_4, %c0_5] : memref<1x128xf32, #tpu.memory_space<vmem>>, vector<1x128xf32>
    %cst = arith.constant dense<0.000000e+00> : vector<128xf32>
    %8 = vector.multi_reduction <add>, %6, %cst [0] : vector<16x128xf32> to vector<128xf32>
    %9 = vector.shape_cast %8 : vector<128xf32> to vector<1x128xf32>
    %10 = arith.addf %7, %9 : vector<1x128xf32>
    %c0_6 = arith.constant 0 : index
    %c0_7 = arith.constant 0 : index
    %11 = vector.load %arg5[%c0_6, %c0_7] : memref<1x128xf32, #tpu.memory_space<vmem>>, vector<1x128xf32>
    tpu.vector_store %arg5[%c0_6, %c0_7], %10 {strides = array<i32>} : memref<1x128xf32, #tpu.memory_space<vmem>>, vector<1x128xf32>,
    %c0_i32_8 = arith.constant 0 : i32
    %12 = arith.cmpi eq, %arg1, %c0_i32_8 : i32
    %13 = arith.extui %12 : i1 to i32
    %c0_i32_9 = arith.constant 0 : i32
    %14 = arith.cmpi ne, %13, %c0_i32_9 : i32
    scf.if %14 {
      %c0_10 = arith.constant 0 : index
      %c0_11 = arith.constant 0 : index
      %15 = vector.load %arg5[%c0_10, %c0_11] : memref<1x128xf32, #tpu.memory_space<vmem>>, vector<1x128xf32>
      %c0_12 = arith.constant 0 : index
      %c0_13 = arith.constant 0 : index
      %16 = vector.load %arg4[%c0_12, %c0_13] : memref<1x128xf32, #tpu.memory_space<vmem>>, vector<1x128xf32>
      tpu.vector_store %arg4[%c0_12, %c0_13], %15 {strides = array<i32>} : memref<1x128xf32, #tpu.memory_space<vmem>>, vector<1x128xf32>,
    } else {
    }
    return
  }
  func.func @transform_0(%arg0: i32, %arg1: i32) -> (i32, i32) {
    %c1_i32 = arith.constant 1 : i32
    %0 = arith.muli %arg0, %c1_i32 : i32
    %1 = arith.addi %0, %arg1 : i32
    %c0_i32 = arith.constant 0 : i32
    %2 = arith.minsi %1, %c0_i32 : i32
    %c0_i32_0 = arith.constant 0 : i32
    %c0_i32_1 = arith.constant 0 : i32
    return %2, %c0_i32_0 : i32, i32
  }
  func.func @transform_1(%arg0: i32, %arg1: i32) -> (i32, i32) {
    %c1_i32 = arith.constant 1 : i32
    %0 = arith.muli %arg0, %c1_i32 : i32
    %1 = arith.addi %0, %arg1 : i32
    %c0_i32 = arith.constant 0 : i32
    %2 = arith.minsi %1, %c0_i32 : i32
    %c0_i32_0 = arith.constant 0 : i32
    %c0_i32_1 = arith.constant 0 : i32
    return %2, %c0_i32_0 : i32, i32
  }
  func.func @transform_2(%arg0: i32, %arg1: i32) -> (i32, i32) {
    %c0_i32 = arith.constant 0 : i32
    %c0_i32_0 = arith.constant 0 : i32
    return %arg0, %c0_i32 : i32, i32
  }
}

</mosaic_0001>

<llo_original>
// kernel: tpu_custom_call.1
$region0: #{tpu_custom_call.1}
  #allocation0 [shape = 'u32[]', space=smem, size = 0x4, offset = 0x4, fixed_abs, tag = 'smem constant byte address 0x4 - core index']
  #allocation1 [shape = 'u32[144,128]{1,0:T(1,128)}', space=vmem, size = 0x12000, scoped, tag = 'internal scratch']
  #allocation2 [shape = 'f32[1,128]{1,0:T(1,128)}', space=vmem, size = 0x200, scoped, tag = 'scratch operand']
  %s0 = inlined_call_operand.hbm [shape: f32[16,128], index: 0, kind: input, shape index: {}]
  %s1 = inlined_call_operand.hbm [shape: f32[16,128], index: 1, kind: input, shape index: {}]
  %s2 = inlined_call_operand.hbm [shape: f32[1,128], index: 2, kind: output, shape index: {}]
  %s3 = sld [smem:[#allocation0]]
  $region34: #{tpu_custom_call.1} parent=0
    _
  %s5 = ssub.s32 1, %s3
  %s6 = scalar_select 0, %s5, %s3
  $region1: #{tpu_custom_call.1} parent=0
    #allocation3 [shape = 'u8[8192]{0}', space=vmem, size = 0x2000, scoped, tag = 'input window, operand 0, single buffered']
    #allocation4 [shape = 's32[1]{0}', space=sflag, size = 0x4, scoped, tag = 'scoped memory for tpu_custom_call.1']
    #allocation5 [shape = 's32[1]{0}', space=sflag, size = 0x4, scoped, tag = 'scoped memory for tpu_custom_call.1']
    #allocation6 [shape = 'u8[8192]{0}', space=vmem, size = 0x2000, scoped, tag = 'input window, operand 1, single buffered']
    #allocation7 [shape = 's32[1]{0}', space=sflag, size = 0x4, scoped, tag = 'scoped memory for tpu_custom_call.1']
    #allocation8 [shape = 'u8[512]{0}', space=vmem, size = 0x400, scoped, tag = 'output window, operand 0, single buffered']
    %7 = vsyncpa [#allocation4], 0
    %8 = vsyncpa [#allocation7], 0
    %9 = vsyncpa [#allocation5], 0
    // Predicated region
    $region2: #{tpu_custom_call.1} parent=1 // pred_check
      _
    $region3: #{tpu_custom_call.1} parent=1 // pred_check_branch
      %11 = sbr.rel (0) target = $region5
    $region4: #{tpu_custom_call.1} parent=1 // pred_region
      %s12 = sadd.s32 0, 0
      %p13 = scmp.lt.s32.totalorder %s12, 0
      %s14 = scalar_select %p13, %s12, 0
      %s15 = smul.u32 2, %s14
      %s17 = ssub.s32 256, 256
      %18 = vsyncadd [#allocation4], %s17
      %s19 = smul.addr %s15, 128
      %s20 = scalar_lea.hbm %s0, %s19
      %s21 = sshll.u32 [#allocation3], 4
      %s22 = int_to_ptr.vmem [resolvable:$true] %s21
      %27 = dma.hbm_to_vmem [thread:$0]  %s20, 256, %s22, [#allocation4], 128, 128, 8
    $region5: #{tpu_custom_call.1} parent=1 // pred_fallthru
      _
    // Predicated region
    $region6: #{tpu_custom_call.1} parent=1 // pred_check
      _
    $region7: #{tpu_custom_call.1} parent=1 // pred_check_branch
      %29 = sbr.rel (0) target = $region9
    $region8: #{tpu_custom_call.1} parent=1 // pred_region
      %s30 = sadd.s32 0, 0
      %p31 = scmp.lt.s32.totalorder %s30, 0
      %s32 = scalar_select %p31, %s30, 0
      %s33 = smul.u32 2, %s32
      %s35 = ssub.s32 256, 256
      %36 = vsyncadd [#allocation7], %s35
      %s37 = smul.addr %s33, 128
      %s38 = scalar_lea.hbm %s1, %s37
      %s39 = sshll.u32 [#allocation6], 4
      %s40 = int_to_ptr.vmem [resolvable:$true] %s39
      %45 = dma.hbm_to_vmem [thread:$0]  %s38, 256, %s40, [#allocation7], 128, 128, 8
    $region9: #{tpu_custom_call.1} parent=1 // pred_fallthru
      _
    // Predicated region
    $region10: #{tpu_custom_call.1} parent=1 // pred_check
      _
    $region11: #{tpu_custom_call.1} parent=1 // pred_check_branch
      %47 = sbr.rel (0) target = $region13
    $region12: #{tpu_custom_call.1} parent=1 // pred_region
      %48 = dma.done [#allocation4], 256
    $region13: #{tpu_custom_call.1} parent=1 // pred_fallthru
      _
    // Predicated region
    $region14: #{tpu_custom_call.1} parent=1 // pred_check
      _
    $region15: #{tpu_custom_call.1} parent=1 // pred_check_branch
      %50 = sbr.rel (0) target = $region17
    $region16: #{tpu_custom_call.1} parent=1 // pred_region
      %51 = dma.done [#allocation7], 256
    $region17: #{tpu_custom_call.1} parent=1 // pred_fallthru
      _
    %s52 = sadd.s32 0, 0
    %p53 = scmp.lt.s32.totalorder %s52, 0
    %s54 = scalar_select %p53, %s52, 0
    %s55 = smul.u32 2, %s54
    %s56 = sadd.s32 0, 0
    %p57 = scmp.lt.s32.totalorder %s56, 0
    %s58 = scalar_select %p57, %s56, 0
    %s59 = smul.u32 2, %s58
    %p60 = scmp.eq.s32.totalorder 0, 0
    // Predicated region
    $region18: #{tpu_custom_call.1} parent=1 // pred_check
      %p61 = pneg %p60
    $region19: #{tpu_custom_call.1} parent=1 // pred_check_branch
      %63 = sbr.rel (%p61) target = $region21
    $region20: #{tpu_custom_call.1} parent=1 // pred_region
      %64 = vst [vmem:[#allocation2] sm:$0x1] 0.0
    $region21: #{tpu_custom_call.1} parent=1 // pred_fallthru
      _
    %v65 = vld [vmem:[#allocation3] sm:$0xff]
    %v66 = vld [vmem:[#allocation3 + $0x8] sm:$0xff]
    %v67 = vld [vmem:[#allocation6] sm:$0xff]
    %v68 = vld [vmem:[#allocation6 + $0x8] sm:$0xff]
    %v69 = vsub.f32 %v65, %v67
    %v70 = vsub.f32 %v66, %v68
    %v71 = vand.u32 2147483647, %v69
    %v72 = vand.u32 2147483647, %v70
    %v73 = vld [vmem:[#allocation2] sm:$0x1]
    %v74 = vadd.f32 %v71, %v72
    %v75 = vrot.slane %v74, 4
    %v76 = vadd.f32 %v74, %v75
    %v77 = vrot.slane %v76, 2
    %v78 = vadd.f32 %v76, %v77
    %v79 = vrot.slane %v78, 1
    %v80 = vadd.f32 %v78, %v79
    %v81 = vadd.f32 %v73, %v80
    %82 = vst [vmem:[#allocation2] sm:$0x1] %v81
    // Predicated region
    $region22: #{tpu_custom_call.1} parent=1 // pred_check
      %p83 = pneg %p60
    $region23: #{tpu_custom_call.1} parent=1 // pred_check_branch
      %85 = sbr.rel (%p83) target = $region25
    $region24: #{tpu_custom_call.1} parent=1 // pred_region
      %v86 = vld [vmem:[#allocation2] sm:$0x1]
      %87 = vst [vmem:[#allocation8] sm:$0x1] %v86
    $region25: #{tpu_custom_call.1} parent=1 // pred_fallthru
      _
    // Predicated region
    $region26: #{tpu_custom_call.1} parent=1 // pred_check
      _
    $region27: #{tpu_custom_call.1} parent=1 // pred_check_branch
      %89 = sbr.rel (0) target = $region29
    $region28: #{tpu_custom_call.1} parent=1 // pred_region
      %s91 = ssub.s32 16, 16
      %92 = vsyncadd [#allocation5], %s91
      %s94 = sshll.u32 [#allocation8], 4
      %s95 = int_to_ptr.vmem [resolvable:$true] %s94
      %97 = dma.vmem_to_hbm [thread:$0]  %s95, 16, %s2, [#allocation5]
    $region29: #{tpu_custom_call.1} parent=1 // pred_fallthru
      _
    // Predicated region
    $region30: #{tpu_custom_call.1} parent=1 // pred_check
      _
    $region31: #{tpu_custom_call.1} parent=1 // pred_check_branch
      %99 = sbr.rel (0) target = $region33
    $region32: #{tpu_custom_call.1} parent=1 // pred_region
      %100 = dma.done [#allocation5], 16
    $region33: #{tpu_custom_call.1} parent=1 // pred_fallthru
      _
    %101 = vsyncpa [#allocation4], 1
    %102 = vsyncpa [#allocation7], 1
    %103 = vsyncpa [#allocation5], 1

</llo_original>
